<compile_context>
chip_gen: v5e
topology: v5e:2x2
jax: 0.10.0
libtpu: 0.0.40
codegen_flags: <defaults>
</compile_context>

<pallas_src>
import functools

import jax
import jax.numpy as jnp
from jax import lax
from jax.experimental import pallas as pl
from jax.experimental.pallas import tpu as pltpu

_VMEM_LIMIT = 32 * 1024 * 1024   # explicit scoped-VMEM budget (safe on v7x 64 MiB)


def _round_up(x, m):
    return (x + m - 1) // m * m


def _pick_row_tile(n, target):
    """Largest divisor of n <= target, preferring 256-multiples (MXU edge),
    then 128-multiples, then multiples of 8.  Falls back to n itself."""
    t = min(target, n)
    for step in (256, 128, 8):
        c = t - t % step
        while c >= step:
            if n % c == 0:
                return c
            c -= step
    return n


def _row_tile_for(n):
    # big tiles for big problems, but keep >=2 grid steps at small sizes so
    # both v7x TensorCores get work.
    return _pick_row_tile(n, 512 if n >= 2048 else max(8, n // 2))


# ----------------------------- Pallas kernels ------------------------------

def _proj_in_kernel(x_ref, w_ref, b_ref, o_ref):
    # 1x1 conv C -> (d0_pad + sd_pad): one MXU push, one lane-dense store.
    x = x_ref[...]
    y = jnp.dot(x, w_ref[...], preferred_element_type=jnp.float32) + b_ref[...]
    o_ref[...] = y.astype(o_ref.dtype)


def _dwconv7_kernel(x_ref, w_ref, b_ref, o_ref, xpad_ref, *, H, W):
    # depthwise 7x7 "SAME" conv on one (batch, channel-tile) block.
    # `scale` is pre-folded into w/b.  The scratch interior sits at rows
    # [3, 3+H) and cols [8, 8+W) (sublane-aligned store); only the halo strips
    # that the tap windows read are zeroed.
    C = x_ref.shape[-1]
    WP = xpad_ref.shape[1]
    xpad_ref[0:3, :, :] = jnp.zeros((3, WP, C), jnp.float32)              # top
    xpad_ref[3 + H:6 + H, :, :] = jnp.zeros((3, WP, C), jnp.float32)      # bottom
    xpad_ref[3:3 + H, 5:8, :] = jnp.zeros((H, 3, C), jnp.float32)         # left
    xpad_ref[3:3 + H, 8 + W:11 + W, :] = jnp.zeros((H, 3, C), jnp.float32)  # right
    xpad_ref[3:3 + H, 8:8 + W, :] = x_ref[0].astype(jnp.float32)          # interior

    w = w_ref[...]                               # (7, 7, C), scale folded in
    b = b_ref[0][None, None, :]                  # (1, 1, C)

    # 8-output-row strips: the accumulator stays register-resident and only
    # 7 column-shifted (strip+6, W, C) slabs are loaded per strip (not 49).
    r0 = 0
    while r0 < H:                                # static -> unrolled at trace
        rs = min(8, H - r0)
        acc = jnp.zeros((rs, W, C), jnp.float32)
        for j in range(7):
            xj = xpad_ref[r0:r0 + rs + 6, 5 + j:5 + j + W, :]
            for i in range(7):                   # leading-dim slice = vreg pick
                acc = acc + xj[i:i + rs] * w[i, j][None, None, :]
        o_ref[0, r0:r0 + rs] = (acc + b).astype(o_ref.dtype)
        r0 += rs


def _recursion_kernel(*refs, dims):
    # Fused gated recursion + proj_out on one pixel tile.
    # refs = (fused_block0, dw, w0, b0, ..., w_{n-2}, b_{n-2}, w_out, b_out, out)
    fused_ref, dw_ref = refs[0], refs[1]
    o_ref = refs[-1]
    wb = refs[2:-1]
    order = len(dims)

    dw = dw_ref[...].astype(jnp.float32)             # (tm, sd_pad), stays in VMEM
    pwa = fused_ref[...][:, :dims[0]].astype(jnp.float32)
    y = pwa * dw[:, :dims[0]]
    off = dims[0]
    for i in range(order - 1):
        w = wb[2 * i][...]
        b = wb[2 * i + 1][...]
        y = jnp.dot(y, w, preferred_element_type=jnp.float32) + b
        y = y * dw[:, off:off + dims[i + 1]]
        off += dims[i + 1]
    w_out = wb[-2][...]
    b_out = wb[-1][...]
    y = jnp.dot(y, w_out, preferred_element_type=jnp.float32) + b_out
    o_ref[...] = y.astype(o_ref.dtype)


# ------------------------------ thin wrappers -------------------------------

def _proj_in(x2d, w, b):
    n, cin = x2d.shape
    fdim = w.shape[1]
    tm = _row_tile_for(n)
    return pl.pallas_call(
        _proj_in_kernel,
        out_shape=jax.ShapeDtypeStruct((n, fdim), x2d.dtype),
        grid=(n // tm,),
        in_specs=[
            pl.BlockSpec((tm, cin), lambda g: (g, 0)),
            pl.BlockSpec((cin, fdim), lambda g: (0, 0)),
            pl.BlockSpec((1, fdim), lambda g: (0, 0)),
        ],
        out_specs=pl.BlockSpec((tm, fdim), lambda g: (g, 0)),
        compiler_params=pltpu.CompilerParams(
            dimension_semantics=("parallel",),
            vmem_limit_bytes=_VMEM_LIMIT),
    )(x2d, w, b)


def _dwconv7(fused4d, w, b, c_off_blocks, c_out):
    B, H, W, _ = fused4d.shape
    tc = 128                                   # sd_pad is always a 128-multiple
    kernel = functools.partial(_dwconv7_kernel, H=H, W=W)
    wp = _round_up(W + 11, 8)                  # interior at col 8, halo at 5..7
    return pl.pallas_call(
        kernel,
        out_shape=jax.ShapeDtypeStruct((B, H, W, c_out), fused4d.dtype),
        grid=(B, c_out // tc),
        in_specs=[
            # channel blocks start after the lane-padded pwa block: no XLA slice
            pl.BlockSpec((1, H, W, tc),
                         lambda bb, cc: (bb, 0, 0, cc + c_off_blocks)),
            pl.BlockSpec((7, 7, tc), lambda bb, cc: (0, 0, cc)),
            pl.BlockSpec((1, tc), lambda bb, cc: (0, cc)),
        ],
        out_specs=pl.BlockSpec((1, H, W, tc), lambda bb, cc: (bb, 0, 0, cc)),
        scratch_shapes=[pltpu.VMEM((H + 6, wp, tc), jnp.float32)],
        compiler_params=pltpu.CompilerParams(
            dimension_semantics=("parallel", "parallel"),
            vmem_limit_bytes=_VMEM_LIMIT),
    )(fused4d, w, b)


def _gn_recursion(fused2d, dw2d, pws_w, pws_b, proj_out_w, proj_out_b,
                  dims, d0_pad):
    n = fused2d.shape[0]
    order = len(dims)
    dim = proj_out_w.shape[1]
    sdp = dw2d.shape[1]
    tm = _row_tile_for(n)

    weights = []
    in_specs = [
        pl.BlockSpec((tm, d0_pad), lambda g: (g, 0)),   # pwa = lane-block 0 of fused
        pl.BlockSpec((tm, sdp), lambda g: (g, 0)),
    ]
    for i in range(order - 1):
        w = pws_w[i]
        b = pws_b[i].reshape(1, -1)
        weights += [w, b]
        in_specs += [pl.BlockSpec(w.shape, lambda g: (0, 0)),
                     pl.BlockSpec(b.shape, lambda g: (0, 0))]
    b_out = proj_out_b.reshape(1, -1)
    weights += [proj_out_w, b_out]
    in_specs += [pl.BlockSpec(proj_out_w.shape, lambda g: (0, 0)),
                 pl.BlockSpec(b_out.shape, lambda g: (0, 0))]

    mm_flops = sum(dims[i] * dims[i + 1] for i in range(order - 1)) + dim * dim
    cost = pl.CostEstimate(
        flops=2 * n * mm_flops + 2 * n * sum(dims),
        transcendentals=0,
        bytes_accessed=4 * n * (d0_pad + sdp + dim),
    )

    kernel = functools.partial(_recursion_kernel, dims=tuple(dims))
    return pl.pallas_call(
        kernel,
        out_shape=jax.ShapeDtypeStruct((n, dim), fused2d.dtype),
        grid=(n // tm,),
        in_specs=in_specs,
        out_specs=pl.BlockSpec((tm, dim), lambda g: (g, 0)),
        compiler_params=pltpu.CompilerParams(
            dimension_semantics=("parallel",),
            vmem_limit_bytes=_VMEM_LIMIT),
        cost_estimate=cost,
    )(fused2d, dw2d, *weights)


# --------------------------- params & forward pass --------------------------

def init_gnconv_params(key, dim, order=5):
    dims = [dim // 2 ** i for i in range(order)]
    dims.reverse()                          # [dim/2^(order-1), ..., dim]
    sd = sum(dims)
    ks = jax.random.split(key, 6 + 2 * (order - 1))

    def nrm(k, shape, fan_in):
        return (jax.random.normal(k, shape, jnp.float32)
                / jnp.sqrt(float(fan_in))).astype(jnp.float32)

    return {
        "dims": dims,
        "proj_in_w": nrm(ks[0], (dim, 2 * dim), dim),
        "proj_in_b": nrm(ks[1], (2 * dim,), dim),
        "dw_w": nrm(ks[2], (7, 7, sd), 49),       # depthwise weight, (kh,kw,C)
        "dw_b": nrm(ks[3], (sd,), 49),
        "proj_out_w": nrm(ks[4], (dim, dim), dim),
        "proj_out_b": nrm(ks[5], (dim,), dim),
        "pws_w": [nrm(ks[6 + 2 * i], (dims[i], dims[i + 1]), dims[i])
                  for i in range(order - 1)],
        "pws_b": [nrm(ks[7 + 2 * i], (dims[i + 1],), dims[i])
                  for i in range(order - 1)],
    }


def gnconv_forward(params, x_nchw, scale=1.0):
    dims = params["dims"]
    sd = sum(dims)
    d0 = dims[0]
    B, C, H, W = x_nchw.shape
    d0_pad = _round_up(d0, 128)                   # lane-pad pwa -> dense stores
    sdp = _round_up(sd, 128)                      # lane-pad the dwconv channels
    F = d0_pad + sdp

    x2d = jnp.transpose(x_nchw, (0, 2, 3, 1)).reshape(B * H * W, C)   # NCHW->rows

    # merge + lane-pad the 1x1-conv weights once (tiny tensors) so activation
    # sized arrays never go through misaligned XLA column slices between kernels.
    w_in, b_in = params["proj_in_w"], params["proj_in_b"]
    w_f = jnp.zeros((C, F), w_in.dtype)
    w_f = w_f.at[:, :d0].set(w_in[:, :d0])
    w_f = w_f.at[:, d0_pad:d0_pad + sd].set(w_in[:, d0:])
    b_f = jnp.zeros((1, F), b_in.dtype)
    b_f = b_f.at[:, :d0].set(b_in[:d0])
    b_f = b_f.at[:, d0_pad:d0_pad + sd].set(b_in[d0:])
    # fold `scale` into the depthwise weights/bias (saves a full-tensor VPU mul)
    dw_w = jnp.zeros((7, 7, sdp), params["dw_w"].dtype
                     ).at[:, :, :sd].set(params["dw_w"] * scale)
    dw_b = jnp.zeros((1, sdp), params["dw_b"].dtype
                     ).at[:, :sd].set(params["dw_b"] * scale)

    # 1) proj_in : pixel-tiled matmul, one lane-dense output [pwa|pad|abc|pad]
    fused2d = _proj_in(x2d, w_f, b_f)                         # (n, F)
    fused4d = fused2d.reshape(B, H, W, F)

    # 2) depthwise 7x7 conv (channel BlockSpec offset skips the pwa lane-block)
    dw = _dwconv7(fused4d, dw_w, dw_b, d0_pad // 128, sdp)    # (B, H, W, sdp)
    dw2d = dw.reshape(B * H * W, sdp)

    # 3) fused gated recursion + proj_out in one pixel-tiled kernel
    y2d = _gn_recursion(fused2d, dw2d, params["pws_w"], params["pws_b"],
                        params["proj_out_w"], params["proj_out_b"],
                        dims, d0_pad)
    y = y2d.reshape(B, H, W, C)
    return jnp.transpose(y, (0, 3, 1, 2))         # back to NCHW


# --------------------------- pure-JAX reference ------------------------------

def gnconv_reference(params, x_nchw, scale=1.0):
    dims = params["dims"]
    order = len(dims)
    sd = sum(dims)
    hp = lax.Precision.HIGHEST                    # match the kernels' f32 math
    x = jnp.transpose(x_nchw, (0, 2, 3, 1))
    fused = (jnp.einsum("bhwc,cd->bhwd", x, params["proj_in_w"], precision=hp)
             + params["proj_in_b"])
    pwa = fused[..., :dims[0]]
    abc = fused[..., dims[0]:]
    dw_w = params["dw_w"][:, :, None, :]                     # HWIO, I=1
    dw = lax.conv_general_dilated(
        abc, dw_w, window_strides=(1, 1), padding="SAME",
        dimension_numbers=("NHWC", "HWIO", "NHWC"),
        feature_group_count=sd, precision=hp) + params["dw_b"]
    dw = dw * scale
    offs = [0]
    for d in dims:
        offs.append(offs[-1] + d)
    dw_list = [dw[..., offs[i]:offs[i + 1]] for i in range(order)]
    y = pwa * dw_list[0]
    for i in range(order - 1):
        y = (jnp.einsum("bhwc,cd->bhwd", y, params["pws_w"][i], precision=hp)
             + params["pws_b"][i]) * dw_list[i + 1]
    y = (jnp.einsum("bhwc,cd->bhwd", y, params["proj_out_w"], precision=hp)
         + params["proj_out_b"])
    return jnp.transpose(y, (0, 3, 1, 2))


# ---------------------------------- main -------------------------------------

if __name__ == "__main__":
    key = jax.random.PRNGKey(0)
    kx, kp = jax.random.split(key)

    # dim must be divisible by 2**(order-1)=16 for the PyTorch split to be exact
    B, C, H, W = 2, 32, 16, 16
    order = 5
    scale = 1.0

    x = jax.random.normal(kx, (B, C, H, W), jnp.float32)
    params = init_gnconv_params(kp, C, order)

    out = gnconv_forward(params, x, scale=scale)
    out = jax.block_until_ready(out)

    ref = gnconv_reference(params, x, scale=scale)
    assert out.shape == (B, C, H, W), out.shape
    err = float(jnp.max(jnp.abs(out - ref)))
    assert err < 1e-3, f"max abs error vs reference = {err}"

    print("KERNEL_OK")
</pallas_src>

<mosaic_0001>
module attributes {stable_mosaic.version = 11 : i64} {
  func.func @_proj_in_kernel(%arg0: i32, %arg1: memref<256x32xf32, #tpu.memory_space<vmem>>, %arg2: memref<32x256xf32, #tpu.memory_space<vmem>>, %arg3: memref<1x256xf32, #tpu.memory_space<vmem>>, %arg4: memref<256x256xf32, #tpu.memory_space<vmem>>) attributes {dimension_semantics = [#tpu.dimension_semantics<parallel>], iteration_bounds = array<i64: 2>, scalar_prefetch = 0 : i64, scratch_operands = 0 : i64, tpu.core_type = #tpu.core_type<tc>, window_params = [{transform_indices = @transform_0, window_bounds = array<i64: 256, 32>}, {pipeline_mode = #tpu.pipeline_mode<synchronous>, transform_indices = @transform_1, window_bounds = array<i64: 32, 256>}, {pipeline_mode = #tpu.pipeline_mode<synchronous>, transform_indices = @transform_2, window_bounds = array<i64: 1, 256>}, {transform_indices = @transform_3, window_bounds = array<i64: 256, 256>}]} {
    %c0 = arith.constant 0 : index
    %c0_0 = arith.constant 0 : index
    %0 = vector.load %arg1[%c0, %c0_0] : memref<256x32xf32, #tpu.memory_space<vmem>>, vector<256x32xf32>
    %c0_1 = arith.constant 0 : index
    %c0_2 = arith.constant 0 : index
    %1 = vector.load %arg2[%c0_1, %c0_2] : memref<32x256xf32, #tpu.memory_space<vmem>>, vector<32x256xf32>
    %cst = arith.constant dense<0.000000e+00> : vector<256x256xf32>
    %2 = tpu.matmul %0, %1, %cst {dimension_numbers = #tpu.dot_dimension_numbers<[1], [0], [0], [1], [0, 0, 1, 1], [], []>} : vector<256x32xf32>, vector<32x256xf32>, vector<256x256xf32> -> vector<256x256xf32>
    %c0_3 = arith.constant 0 : index
    %c0_4 = arith.constant 0 : index
    %3 = vector.load %arg3[%c0_3, %c0_4] : memref<1x256xf32, #tpu.memory_space<vmem>>, vector<1x256xf32>
    %4 = vector.broadcast %3 : vector<1x256xf32> to vector<256x256xf32>
    %5 = arith.addf %2, %4 : vector<256x256xf32>
    %c0_5 = arith.constant 0 : index
    %c0_6 = arith.constant 0 : index
    %6 = vector.load %arg4[%c0_5, %c0_6] : memref<256x256xf32, #tpu.memory_space<vmem>>, vector<256x256xf32>
    tpu.vector_store %arg4[%c0_5, %c0_6], %5 {strides = array<i32>} : memref<256x256xf32, #tpu.memory_space<vmem>>, vector<256x256xf32>,
    return
  }
  func.func @transform_0(%arg0: i32) -> (i32, i32) {
    %c0_i32 = arith.constant 0 : i32
    %c0_i32_0 = arith.constant 0 : i32
    return %arg0, %c0_i32 : i32, i32
  }
  func.func @transform_1(%arg0: i32) -> (i32, i32) {
    %c0_i32 = arith.constant 0 : i32
    %c0_i32_0 = arith.constant 0 : i32
    %c0_i32_1 = arith.constant 0 : i32
    return %c0_i32, %c0_i32_0 : i32, i32
  }
  func.func @transform_2(%arg0: i32) -> (i32, i32) {
    %c0_i32 = arith.constant 0 : i32
    %c0_i32_0 = arith.constant 0 : i32
    %c0_i32_1 = arith.constant 0 : i32
    return %c0_i32, %c0_i32_0 : i32, i32
  }
  func.func @transform_3(%arg0: i32) -> (i32, i32) {
    %c0_i32 = arith.constant 0 : i32
    %c0_i32_0 = arith.constant 0 : i32
    return %arg0, %c0_i32 : i32, i32
  }
}

</mosaic_0001>

<llo_original>
// kernel: tpu_custom_call.1
$region0: #{tpu_custom_call.1}
  #allocation0 [shape = 'u32[]', space=smem, size = 0x4, offset = 0x4, fixed_abs, tag = 'smem constant byte address 0x4 - core index']
  #allocation1 [shape = 'u32[72,128]{1,0:T(1,128)}', space=vmem, size = 0x9000, scoped, tag = 'internal scratch']
  %s0 = inlined_call_operand.vmem [shape: f32[512,32], index: 0, kind: input, shape index: {}]
  %s1 = inlined_call_operand.vmem [shape: f32[32,256], index: 1, kind: input, shape index: {}]
  %s2 = inlined_call_operand.vmem [shape: f32[1,256], index: 2, kind: input, shape index: {}]
  %s3 = inlined_call_operand.hbm [shape: f32[512,256], index: 3, kind: output, shape index: {}]
  %s4 = sld [smem:[#allocation0]]
  $region45: #{tpu_custom_call.1} parent=0
    _
  %s6 = ssub.s32 1, %s4
  %s7 = scalar_select 0, %s6, %s4
  $region1: #{tpu_custom_call.1} parent=0
    #allocation2 [shape = 'u8[524288]{0}', space=vmem, size = 0x80000, scoped, tag = 'output window, operand 0']
    #allocation3 [shape = 's32[2]{0}', space=sflag, size = 0x8, scoped, tag = 'scoped memory for tpu_custom_call.1']
    %8 = vsyncpa [#allocation3], 0
    %s9 = scalar_lea.sflag [#allocation3], 1
    %10 = vsyncpa %s9, 0
    loop: start=0, step=1, limit=4
    $region2: #{tpu_custom_call.1} parent=1 // loop_pre_header
      _
    $region3: #{tpu_custom_call.1} parent=1 // loop_header
      %s12 = sphi 0, %s16
      %p13 = scmp.ge.s32.totalorder %s12, 4
      %s22 = sphi 0, %s24
      %s25 = sphi 0, %s22
      %s26 = sphi 0, %s25
      %s42 = sphi 0, %s26
      %s46 = sphi 0, %s46
      %s48 = sphi 0, %s46
      %s49 = sphi 0, %s48
      %s63 = sphi 0, %s49
      %s67 = sphi 0, %s67
      %s69 = sphi 0, %s67
      %s70 = sphi 0, %s69
      %s84 = sphi 0, %s70
      %s90 = sphi 0, %s92
      %s93 = sphi 0, %s90
      %s94 = sphi 0, %s93
      %s110 = sphi 0, %s94
    $region4: #{tpu_custom_call.1} parent=1 // loop_header_branch
      %15 = sbr.rel (%p13) target = $region8
    $region5: #{tpu_custom_call.1} parent=1 // loop_body
      %s17 = ssub.s32 %s12, 1
      %s18 = ssub.s32 %s12, 2
      %s19 = sadd.s32 %s12, 1
      %s20 = ssub.s32 %s12, %s19
      %p21 = scmp.eq.s32.totalorder %s20, 0
      %s23 = sadd.s32 %s22, 1
      %s24 = scalar_select %p21, %s22, %s23
      %p27 = pneg %p21
      %p28 = scmp.eq.s32.totalorder %s12, 1
      %p29 = por %p27, %p28
      %p30 = scmp.ne.s32.totalorder %s22, %s25
      %p31 = scmp.eq.s32.totalorder %s12, 0
      %p32 = por %p30, %p31
      %p33 = scmp.ne.s32.totalorder %s22, %s25
      %p34 = scmp.eq.s32.totalorder %s17, 1
      %p35 = por %p33, %p34
      %p36 = scmp.ne.s32.totalorder %s25, %s26
      %p37 = scmp.eq.s32.totalorder %s17, 0
      %p38 = por %p36, %p37
      %p39 = scmp.ne.s32.totalorder %s25, %s26
      %p40 = scmp.eq.s32.totalorder %s18, 1
      %p41 = por %p39, %p40
      %p43 = scmp.ne.s32.totalorder %s26, %s42
      %p44 = scmp.eq.s32.totalorder %s18, 0
      %p45 = por %p43, %p44
      %s47 = sadd.s32 %s46, 1
      %p50 = scmp.eq.s32.totalorder %s12, 1
      %p51 = scmp.ne.s32.totalorder %s46, %s48
      %p52 = scmp.eq.s32.totalorder %s12, 0
      %p53 = por %p51, %p52
      %p54 = scmp.ne.s32.totalorder %s46, %s48
      %p55 = scmp.eq.s32.totalorder %s17, 1
      %p56 = por %p54, %p55
      %p57 = scmp.ne.s32.totalorder %s48, %s49
      %p58 = scmp.eq.s32.totalorder %s17, 0
      %p59 = por %p57, %p58
      %p60 = scmp.ne.s32.totalorder %s48, %s49
      %p61 = scmp.eq.s32.totalorder %s18, 1
      %p62 = por %p60, %p61
      %p64 = scmp.ne.s32.totalorder %s49, %s63
      %p65 = scmp.eq.s32.totalorder %s18, 0
      %p66 = por %p64, %p65
      %s68 = sadd.s32 %s67, 1
      %p71 = scmp.eq.s32.totalorder %s12, 1
      %p72 = scmp.ne.s32.totalorder %s67, %s69
      %p73 = scmp.eq.s32.totalorder %s12, 0
      %p74 = por %p72, %p73
      %p75 = scmp.ne.s32.totalorder %s67, %s69
      %p76 = scmp.eq.s32.totalorder %s17, 1
      %p77 = por %p75, %p76
      %p78 = scmp.ne.s32.totalorder %s69, %s70
      %p79 = scmp.eq.s32.totalorder %s17, 0
      %p80 = por %p78, %p79
      %p81 = scmp.ne.s32.totalorder %s69, %s70
      %p82 = scmp.eq.s32.totalorder %s18, 1
      %p83 = por %p81, %p82
      %p85 = scmp.ne.s32.totalorder %s70, %s84
      %p86 = scmp.eq.s32.totalorder %s18, 0
      %p87 = por %p85, %p86
      %s88 = ssub.s32 %s12, %s19
      %p89 = scmp.eq.s32.totalorder %s88, 0
      %s91 = sadd.s32 %s90, 1
      %s92 = scalar_select %p89, %s90, %s91
      %p95 = pneg %p89
      %p96 = scmp.eq.s32.totalorder %s12, 1
      %p97 = por %p95, %p96
      %p98 = scmp.ne.s32.totalorder %s90, %s93
      %p99 = scmp.eq.s32.totalorder %s12, 0
      %p100 = por %p98, %p99
      %p101 = scmp.ne.s32.totalorder %s90, %s93
      %p102 = scmp.eq.s32.totalorder %s17, 1
      %p103 = por %p101, %p102
      %p104 = scmp.ne.s32.totalorder %s93, %s94
      %p105 = scmp.eq.s32.totalorder %s17, 0
      %p106 = por %p104, %p105
      %p107 = scmp.ne.s32.totalorder %s93, %s94
      %p108 = scmp.eq.s32.totalorder %s18, 1
      %p109 = por %p107, %p108
      %p111 = scmp.ne.s32.totalorder %s94, %s110
      %p112 = scmp.eq.s32.totalorder %s18, 0
      %p113 = por %p111, %p112
      %p114 = scmp.le.s32.totalorder 1, %s12
      %p115 = scmp.lt.s32.totalorder %s12, 3
      %p116 = pnand %p114, %p115
      %p117 = pneg %p116
      // Predicated region
      $region9: #{tpu_custom_call.1} parent=5 // pred_check
        _
      $region10: #{tpu_custom_call.1} parent=5 // pred_check_branch
        %119 = sbr.rel (%p116) target = $region12
      $region11: #{tpu_custom_call.1} parent=5 // pred_region
        %s120 = ssub.s32 %s12, 1
        // Predicated region
        $region13: #{tpu_custom_call.1} parent=11 // pred_check
          %p121 = pneg %p59
        $region14: #{tpu_custom_call.1} parent=11 // pred_check_branch
          %123 = sbr.rel (%p121) target = $region16
        $region15: #{tpu_custom_call.1} parent=11 // pred_region
          _
        $region16: #{tpu_custom_call.1} parent=11 // pred_fallthru
          _
        // Predicated region
        $region17: #{tpu_custom_call.1} parent=11 // pred_check
          %p124 = pneg %p80
        $region18: #{tpu_custom_call.1} parent=11 // pred_check_branch
          %126 = sbr.rel (%p124) target = $region20
        $region19: #{tpu_custom_call.1} parent=11 // pred_region
          _
        $region20: #{tpu_custom_call.1} parent=11 // pred_fallthru
          _
      $region12: #{tpu_custom_call.1} parent=5 // pred_fallthru
        _
      %p127 = scmp.lt.s32.totalorder %s12, 2
      // Predicated region
      $region21: #{tpu_custom_call.1} parent=5 // pred_check
        %p128 = pneg %p127
      $region22: #{tpu_custom_call.1} parent=5 // pred_check_branch
        %130 = sbr.rel (%p128) target = $region24
      $region23: #{tpu_custom_call.1} parent=5 // pred_region
        // Predicated region
        $region25: #{tpu_custom_call.1} parent=23 // pred_check
          %p131 = pneg %p32
        $region26: #{tpu_custom_call.1} parent=23 // pred_check_branch
          %133 = sbr.rel (%p131) target = $region28
        $region27: #{tpu_custom_call.1} parent=23 // pred_region
          %s134 = smul.u32 32, %s12
          %p135 = scmp.lt.s32.totalorder %s134, 63
          %s136 = scalar_select %p135, %s134, 63
          %s137 = smul.addr %s136, 8
          %s138 = scalar_lea.vmem %s0, %s137
          %s139 = smul.u32 32, %s12
        $region28: #{tpu_custom_call.1} parent=23 // pred_fallthru
          _
      $region24: #{tpu_custom_call.1} parent=5 // pred_fallthru
        _
      %p140 = scmp.le.s32.totalorder 1, %s12
      %p141 = scmp.lt.s32.totalorder %s12, 3
      %p142 = pnand %p140, %p141
      %p143 = pneg %p142
      // Predicated region
      $region29: #{tpu_custom_call.1} parent=5 // pred_check
        _
      $region30: #{tpu_custom_call.1} parent=5 // pred_check_branch
        %145 = sbr.rel (%p142) target = $region32
      $region31: #{tpu_custom_call.1} parent=5 // pred_region
        %s146 = ssub.s32 %s12, 1
        %s147 = smul.u32 32, %s17
        %p148 = scmp.lt.s32.totalorder %s147, 63
        %s149 = scalar_select %p148, %s147, 63
        %s150 = smul.addr %s149, 8
        %s151 = scalar_lea.vmem %s0, %s150
        %p152 = pneg %p38
        %p153 = pneg %p35
        %p154 = pneg %p59
        %p155 = pneg %p56
        %p156 = pneg %p80
        %p157 = pneg %p77
        %p158 = pneg %p106
        %p159 = pneg %p103
        %s160 = sand.u32 %s93, 1
        %s161 = scalar_lea.sflag [#allocation3], %s160
        %s162 = sand.u32 %s93, 1
        %s163 = smul.addr %s162, 512
        %s164 = scalar_lea.vmem [#allocation2], %s163
        %s165 = smul.u32 32, %s17
        %p166 = scmp.lt.s32.totalorder %s165, 63
        %s167 = scalar_select %p166, %s165, 63
        %s168 = smul.addr %s167, 8
        %s169 = scalar_lea.vmem %s0, %s168
        %s170 = smul.u32 32, %s17
        %s171 = smul.u32 32, %s17
        %v172 = vld [vmem:[%s169] sm:$0xff]
        %v173 = vld [vmem:[%s169 + $0x8] sm:$0xff]
        %v174 = vld [vmem:[%s169 + $0x10] sm:$0xff]
        %v175 = vld [vmem:[%s169 + $0x18] sm:$0xff]
        %v176 = vld [vmem:[%s169 + $0x20] sm:$0xff]
        %v177 = vld [vmem:[%s169 + $0x28] sm:$0xff]
        %v178 = vld [vmem:[%s169 + $0x30] sm:$0xff]
        %v179 = vld [vmem:[%s169 + $0x38] sm:$0xff]
        %v180 = vld [vmem:[%s169 + $0x40] sm:$0xff]
        %v181 = vld [vmem:[%s169 + $0x48] sm:$0xff]
        %v182 = vld [vmem:[%s169 + $0x50] sm:$0xff]
        %v183 = vld [vmem:[%s169 + $0x58] sm:$0xff]
        %v184 = vld [vmem:[%s169 + $0x60] sm:$0xff]
        %v185 = vld [vmem:[%s169 + $0x68] sm:$0xff]
        %v186 = vld [vmem:[%s169 + $0x70] sm:$0xff]
        %v187 = vld [vmem:[%s169 + $0x78] sm:$0xff]
        %v188 = vld [vmem:[%s169 + $0x80] sm:$0xff]
        %v189 = vld [vmem:[%s169 + $0x88] sm:$0xff]
        %v190 = vld [vmem:[%s169 + $0x90] sm:$0xff]
        %v191 = vld [vmem:[%s169 + $0x98] sm:$0xff]
        %v192 = vld [vmem:[%s169 + $0xa0] sm:$0xff]
        %v193 = vld [vmem:[%s169 + $0xa8] sm:$0xff]
        %v194 = vld [vmem:[%s169 + $0xb0] sm:$0xff]
        %v195 = vld [vmem:[%s169 + $0xb8] sm:$0xff]
        %v196 = vld [vmem:[%s169 + $0xc0] sm:$0xff]
        %v197 = vld [vmem:[%s169 + $0xc8] sm:$0xff]
        %v198 = vld [vmem:[%s169 + $0xd0] sm:$0xff]
        %v199 = vld [vmem:[%s169 + $0xd8] sm:$0xff]
        %v200 = vld [vmem:[%s169 + $0xe0] sm:$0xff]
        %v201 = vld [vmem:[%s169 + $0xe8] sm:$0xff]
        %v202 = vld [vmem:[%s169 + $0xf0] sm:$0xff]
        %v203 = vld [vmem:[%s169 + $0xf8] sm:$0xff]
        %v204 = vld [vmem:[%s1] sm:$0xff]
        %v205 = vld [vmem:[%s1 + $0x8] sm:$0xff]
        %v206 = vld [vmem:[%s1 + $0x10] sm:$0xff]
        %v207 = vld [vmem:[%s1 + $0x18] sm:$0xff]
        %v208 = vld [vmem:[%s1 + $0x20] sm:$0xff]
        %v209 = vld [vmem:[%s1 + $0x28] sm:$0xff]
        %v210 = vld [vmem:[%s1 + $0x30] sm:$0xff]
        %v211 = vld [vmem:[%s1 + $0x38] sm:$0xff]
        %v212 = vld [vmem:[%s2] sm:$0x3]
        %v214 = vperm.slane %v212, 0
        %v215 = vperm.slane %v212, 1
        %vm218 = vcmask 261120
        %v220 = vsel %vm218, %v172, 0
        %v223 = vsel %vm218, %v173, 0
        %v226 = vsel %vm218, %v174, 0
        %v229 = vsel %vm218, %v175, 0
        %v232 = vsel %vm218, %v176, 0
        %v235 = vsel %vm218, %v177, 0
        %v238 = vsel %vm218, %v178, 0
        %v241 = vsel %vm218, %v179, 0
        %v244 = vsel %vm218, %v180, 0
        %v247 = vsel %vm218, %v181, 0
        %v250 = vsel %vm218, %v182, 0
        %v253 = vsel %vm218, %v183, 0
        %v256 = vsel %vm218, %v184, 0
        %v259 = vsel %vm218, %v185, 0
        %v262 = vsel %vm218, %v186, 0
        %v265 = vsel %vm218, %v187, 0
        %v268 = vsel %vm218, %v188, 0
        %v271 = vsel %vm218, %v189, 0
        %v274 = vsel %vm218, %v190, 0
        %v277 = vsel %vm218, %v191, 0
        %v280 = vsel %vm218, %v192, 0
        %v283 = vsel %vm218, %v193, 0
        %v286 = vsel %vm218, %v194, 0
        %v289 = vsel %vm218, %v195, 0
        %v292 = vsel %vm218, %v196, 0
        %v295 = vsel %vm218, %v197, 0
        %v298 = vsel %vm218, %v198, 0
        %v301 = vsel %vm218, %v199, 0
        %v304 = vsel %vm218, %v200, 0
        %v307 = vsel %vm218, %v201, 0
        %v310 = vsel %vm218, %v202, 0
        %v313 = vsel %vm218, %v203, 0
        %315 = vmatpush.msra.mxu0 0.0
        %316 = vmatpush.msra.mxu0 0.0
        %317 = vmatpush.msra.mxu0 0.0
        %318 = vmatpush.msra.mxu0 0.0
        %319 = vmatpush.msra.mxu0 0.0
        %320 = vmatpush.msra.mxu0 0.0
        %321 = vmatpush.msra.mxu0 0.0
        %322 = vmatpush.msra.mxu0 0.0
        %323 = vmatpush.msra.mxu0 0.0
        %324 = vmatpush.msra.mxu0 0.0
        %325 = vmatpush.msra.mxu0 0.0
        %326 = vmatpush.msra.mxu0 0.0
        %327 = vmatpush.msra.mxu0 %v210
        %328 = vmatpush.msra.mxu0 %v208
        %329 = vmatpush.msra.mxu0 %v206
        %330 = vmatpush.msra.mxu0 %v204
        %331 = vmatmul.f32.gmra.mxu0 %v220
        %v332 = vpop.f32.mrf.mxu0
        %v333 = vadd.f32 %v214, %v332
        %334 = vmatmul.f32.gmra.mxu0 %v223
        %v335 = vpop.f32.mrf.mxu0
        %v336 = vadd.f32 %v214, %v335
        %337 = vmatmul.f32.gmra.mxu0 %v226
        %v338 = vpop.f32.mrf.mxu0
        %v339 = vadd.f32 %v214, %v338
        %340 = vmatmul.f32.gmra.mxu0 %v229
        %v341 = vpop.f32.mrf.mxu0
        %v342 = vadd.f32 %v214, %v341
        %343 = vmatmul.f32.gmra.mxu0 %v232
        %v344 = vpop.f32.mrf.mxu0
        %v345 = vadd.f32 %v214, %v344
        %346 = vmatmul.f32.gmra.mxu0 %v235
        %v347 = vpop.f32.mrf.mxu0
        %v348 = vadd.f32 %v214, %v347
        %349 = vmatmul.f32.gmra.mxu0 %v238
        %v350 = vpop.f32.mrf.mxu0
        %v351 = vadd.f32 %v214, %v350
        %352 = vmatmul.f32.gmra.mxu0 %v241
        %v353 = vpop.f32.mrf.mxu0
        %v354 = vadd.f32 %v214, %v353
        %355 = vmatmul.f32.gmra.mxu0 %v244
        %v356 = vpop.f32.mrf.mxu0
        %v357 = vadd.f32 %v214, %v356
        %358 = vmatmul.f32.gmra.mxu0 %v247
        %v359 = vpop.f32.mrf.mxu0
        %v360 = vadd.f32 %v214, %v359
        %361 = vmatmul.f32.gmra.mxu0 %v250
        %v362 = vpop.f32.mrf.mxu0
        %v363 = vadd.f32 %v214, %v362
        %364 = vmatmul.f32.gmra.mxu0 %v253
        %v365 = vpop.f32.mrf.mxu0
        %v366 = vadd.f32 %v214, %v365
        %367 = vmatmul.f32.gmra.mxu0 %v256
        %v368 = vpop.f32.mrf.mxu0
        %v369 = vadd.f32 %v214, %v368
        %370 = vmatmul.f32.gmra.mxu0 %v259
        %v371 = vpop.f32.mrf.mxu0
        %v372 = vadd.f32 %v214, %v371
        %373 = vmatmul.f32.gmra.mxu0 %v262
        %v374 = vpop.f32.mrf.mxu0
        %v375 = vadd.f32 %v214, %v374
        %376 = vmatmul.f32.gmra.mxu0 %v265
        %v377 = vpop.f32.mrf.mxu0
        %v378 = vadd.f32 %v214, %v377
        %379 = vmatmul.f32.gmra.mxu0 %v268
        %v380 = vpop.f32.mrf.mxu0
        %v381 = vadd.f32 %v214, %v380
        %382 = vmatmul.f32.gmra.mxu0 %v271
        %v383 = vpop.f32.mrf.mxu0
        %v384 = vadd.f32 %v214, %v383
        %385 = vmatmul.f32.gmra.mxu0 %v274
        %v386 = vpop.f32.mrf.mxu0
        %v387 = vadd.f32 %v214, %v386
        %388 = vmatmul.f32.gmra.mxu0 %v277
        %v389 = vpop.f32.mrf.mxu0
        %v390 = vadd.f32 %v214, %v389
        %391 = vmatmul.f32.gmra.mxu0 %v280
        %v392 = vpop.f32.mrf.mxu0
        %v393 = vadd.f32 %v214, %v392
        %394 = vmatmul.f32.gmra.mxu0 %v283
        %v395 = vpop.f32.mrf.mxu0
        %v396 = vadd.f32 %v214, %v395
        %397 = vmatmul.f32.gmra.mxu0 %v286
        %v398 = vpop.f32.mrf.mxu0
        %v399 = vadd.f32 %v214, %v398
        %400 = vmatmul.f32.gmra.mxu0 %v289
        %v401 = vpop.f32.mrf.mxu0
        %v402 = vadd.f32 %v214, %v401
        %403 = vmatmul.f32.gmra.mxu0 %v292
        %v404 = vpop.f32.mrf.mxu0
        %v405 = vadd.f32 %v214, %v404
        %406 = vmatmul.f32.gmra.mxu0 %v295
        %v407 = vpop.f32.mrf.mxu0
        %v408 = vadd.f32 %v214, %v407
        %409 = vmatmul.f32.gmra.mxu0 %v298
        %v410 = vpop.f32.mrf.mxu0
        %v411 = vadd.f32 %v214, %v410
        %412 = vmatmul.f32.gmra.mxu0 %v301
        %v413 = vpop.f32.mrf.mxu0
        %v414 = vadd.f32 %v214, %v413
        %415 = vmatmul.f32.gmra.mxu0 %v304
        %v416 = vpop.f32.mrf.mxu0
        %v417 = vadd.f32 %v214, %v416
        %418 = vmatmul.f32.gmra.mxu0 %v307
        %v419 = vpop.f32.mrf.mxu0
        %v420 = vadd.f32 %v214, %v419
        %421 = vmatmul.f32.gmra.mxu0 %v310
        %v422 = vpop.f32.mrf.mxu0
        %v423 = vadd.f32 %v214, %v422
        %424 = vmatmul.f32.gmra.mxu0 %v313
        %v425 = vpop.f32.mrf.mxu0
        %v426 = vadd.f32 %v214, %v425
        %427 = vdwg.mxu0
        %428 = vmatpush.msra.mxu0 0.0
        %429 = vmatpush.msra.mxu0 0.0
        %430 = vmatpush.msra.mxu0 0.0
        %431 = vmatpush.msra.mxu0 0.0
        %432 = vmatpush.msra.mxu0 0.0
        %433 = vmatpush.msra.mxu0 0.0
        %434 = vmatpush.msra.mxu0 0.0
        %435 = vmatpush.msra.mxu0 0.0
        %436 = vmatpush.msra.mxu0 0.0
        %437 = vmatpush.msra.mxu0 0.0
        %438 = vmatpush.msra.mxu0 0.0
        %439 = vmatpush.msra.mxu0 0.0
        %440 = vmatpush.msra.mxu0 %v211
        %441 = vmatpush.msra.mxu0 %v209
        %442 = vmatpush.msra.mxu0 %v207
        %443 = vmatpush.msra.mxu0 %v205
        %444 = vmatmul.f32.gmra.mxu0 %v220
        %v445 = vpop.f32.mrf.mxu0
        %v446 = vadd.f32 %v215, %v445
        %447 = vmatmul.f32.gmra.mxu0 %v223
        %v448 = vpop.f32.mrf.mxu0
        %v449 = vadd.f32 %v215, %v448
        %450 = vmatmul.f32.gmra.mxu0 %v226
        %v451 = vpop.f32.mrf.mxu0
        %v452 = vadd.f32 %v215, %v451
        %453 = vmatmul.f32.gmra.mxu0 %v229
        %v454 = vpop.f32.mrf.mxu0
        %v455 = vadd.f32 %v215, %v454
        %456 = vmatmul.f32.gmra.mxu0 %v232
        %v457 = vpop.f32.mrf.mxu0
        %v458 = vadd.f32 %v215, %v457
        %459 = vmatmul.f32.gmra.mxu0 %v235
        %v460 = vpop.f32.mrf.mxu0
        %v461 = vadd.f32 %v215, %v460
        %462 = vmatmul.f32.gmra.mxu0 %v238
        %v463 = vpop.f32.mrf.mxu0
        %v464 = vadd.f32 %v215, %v463
        %465 = vmatmul.f32.gmra.mxu0 %v241
        %v466 = vpop.f32.mrf.mxu0
        %v467 = vadd.f32 %v215, %v466
        %468 = vmatmul.f32.gmra.mxu0 %v244
        %v469 = vpop.f32.mrf.mxu0
        %v470 = vadd.f32 %v215, %v469
        %471 = vmatmul.f32.gmra.mxu0 %v247
        %v472 = vpop.f32.mrf.mxu0
        %v473 = vadd.f32 %v215, %v472
        %474 = vmatmul.f32.gmra.mxu0 %v250
        %v475 = vpop.f32.mrf.mxu0
        %v476 = vadd.f32 %v215, %v475
        %477 = vmatmul.f32.gmra.mxu0 %v253
        %v478 = vpop.f32.mrf.mxu0
        %v479 = vadd.f32 %v215, %v478
        %480 = vmatmul.f32.gmra.mxu0 %v256
        %v481 = vpop.f32.mrf.mxu0
        %v482 = vadd.f32 %v215, %v481
        %483 = vmatmul.f32.gmra.mxu0 %v259
        %v484 = vpop.f32.mrf.mxu0
        %v485 = vadd.f32 %v215, %v484
        %486 = vmatmul.f32.gmra.mxu0 %v262
        %v487 = vpop.f32.mrf.mxu0
        %v488 = vadd.f32 %v215, %v487
        %489 = vmatmul.f32.gmra.mxu0 %v265
        %v490 = vpop.f32.mrf.mxu0
        %v491 = vadd.f32 %v215, %v490
        %492 = vmatmul.f32.gmra.mxu0 %v268
        %v493 = vpop.f32.mrf.mxu0
        %v494 = vadd.f32 %v215, %v493
        %495 = vmatmul.f32.gmra.mxu0 %v271
        %v496 = vpop.f32.mrf.mxu0
        %v497 = vadd.f32 %v215, %v496
        %498 = vmatmul.f32.gmra.mxu0 %v274
        %v499 = vpop.f32.mrf.mxu0
        %v500 = vadd.f32 %v215, %v499
        %501 = vmatmul.f32.gmra.mxu0 %v277
        %v502 = vpop.f32.mrf.mxu0
        %v503 = vadd.f32 %v215, %v502
        %504 = vmatmul.f32.gmra.mxu0 %v280
        %v505 = vpop.f32.mrf.mxu0
        %v506 = vadd.f32 %v215, %v505
        %507 = vmatmul.f32.gmra.mxu0 %v283
        %v508 = vpop.f32.mrf.mxu0
        %v509 = vadd.f32 %v215, %v508
        %510 = vmatmul.f32.gmra.mxu0 %v286
        %v511 = vpop.f32.mrf.mxu0
        %v512 = vadd.f32 %v215, %v511
        %513 = vmatmul.f32.gmra.mxu0 %v289
        %v514 = vpop.f32.mrf.mxu0
        %v515 = vadd.f32 %v215, %v514
        %516 = vmatmul.f32.gmra.mxu0 %v292
        %v517 = vpop.f32.mrf.mxu0
        %v518 = vadd.f32 %v215, %v517
        %519 = vmatmul.f32.gmra.mxu0 %v295
        %v520 = vpop.f32.mrf.mxu0
        %v521 = vadd.f32 %v215, %v520
        %522 = vmatmul.f32.gmra.mxu0 %v298
        %v523 = vpop.f32.mrf.mxu0
        %v524 = vadd.f32 %v215, %v523
        %525 = vmatmul.f32.gmra.mxu0 %v301
        %v526 = vpop.f32.mrf.mxu0
        %v527 = vadd.f32 %v215, %v526
        %528 = vmatmul.f32.gmra.mxu0 %v304
        %v529 = vpop.f32.mrf.mxu0
        %v530 = vadd.f32 %v215, %v529
        %531 = vmatmul.f32.gmra.mxu0 %v307
        %v532 = vpop.f32.mrf.mxu0
        %v533 = vadd.f32 %v215, %v532
        %534 = vmatmul.f32.gmra.mxu0 %v310
        %v535 = vpop.f32.mrf.mxu0
        %v536 = vadd.f32 %v215, %v535
        %537 = vmatmul.f32.gmra.mxu0 %v313
        %v538 = vpop.f32.mrf.mxu0
        %v539 = vadd.f32 %v215, %v538
        %540 = vdwg.mxu0
        %541 = vst [vmem:[%s164] sm:$0xff] %v333
        %542 = vst [vmem:[%s164 + $0x8] sm:$0xff] %v446
        %543 = vst [vmem:[%s164 + $0x10] sm:$0xff] %v336
        %544 = vst [vmem:[%s164 + $0x18] sm:$0xff] %v449
        %545 = vst [vmem:[%s164 + $0x20] sm:$0xff] %v339
        %546 = vst [vmem:[%s164 + $0x28] sm:$0xff] %v452
        %547 = vst [vmem:[%s164 + $0x30] sm:$0xff] %v342
        %548 = vst [vmem:[%s164 + $0x38] sm:$0xff] %v455
        %549 = vst [vmem:[%s164 + $0x40] sm:$0xff] %v345
        %550 = vst [vmem:[%s164 + $0x48] sm:$0xff] %v458
        %551 = vst [vmem:[%s164 + $0x50] sm:$0xff] %v348
        %552 = vst [vmem:[%s164 + $0x58] sm:$0xff] %v461
        %553 = vst [vmem:[%s164 + $0x60] sm:$0xff] %v351
        %554 = vst [vmem:[%s164 + $0x68] sm:$0xff] %v464
        %555 = vst [vmem:[%s164 + $0x70] sm:$0xff] %v354
        %556 = vst [vmem:[%s164 + $0x78] sm:$0xff] %v467
        %557 = vst [vmem:[%s164 + $0x80] sm:$0xff] %v357
        %558 = vst [vmem:[%s164 + $0x88] sm:$0xff] %v470
        %559 = vst [vmem:[%s164 + $0x90] sm:$0xff] %v360
        %560 = vst [vmem:[%s164 + $0x98] sm:$0xff] %v473
        %561 = vst [vmem:[%s164 + $0xa0] sm:$0xff] %v363
        %562 = vst [vmem:[%s164 + $0xa8] sm:$0xff] %v476
        %563 = vst [vmem:[%s164 + $0xb0] sm:$0xff] %v366
        %564 = vst [vmem:[%s164 + $0xb8] sm:$0xff] %v479
        %565 = vst [vmem:[%s164 + $0xc0] sm:$0xff] %v369
        %566 = vst [vmem:[%s164 + $0xc8] sm:$0xff] %v482
        %567 = vst [vmem:[%s164 + $0xd0] sm:$0xff] %v372
        %568 = vst [vmem:[%s164 + $0xd8] sm:$0xff] %v485
        %569 = vst [vmem:[%s164 + $0xe0] sm:$0xff] %v375
        %570 = vst [vmem:[%s164 + $0xe8] sm:$0xff] %v488
        %571 = vst [vmem:[%s164 + $0xf0] sm:$0xff] %v378
        %572 = vst [vmem:[%s164 + $0xf8] sm:$0xff] %v491
        %573 = vst [vmem:[%s164 + $0x100] sm:$0xff] %v381
        %574 = vst [vmem:[%s164 + $0x108] sm:$0xff] %v494
        %575 = vst [vmem:[%s164 + $0x110] sm:$0xff] %v384
        %576 = vst [vmem:[%s164 + $0x118] sm:$0xff] %v497
        %577 = vst [vmem:[%s164 + $0x120] sm:$0xff] %v387
        %578 = vst [vmem:[%s164 + $0x128] sm:$0xff] %v500
        %579 = vst [vmem:[%s164 + $0x130] sm:$0xff] %v390
        %580 = vst [vmem:[%s164 + $0x138] sm:$0xff] %v503
        %581 = vst [vmem:[%s164 + $0x140] sm:$0xff] %v393
        %582 = vst [vmem:[%s164 + $0x148] sm:$0xff] %v506
        %583 = vst [vmem:[%s164 + $0x150] sm:$0xff] %v396
        %584 = vst [vmem:[%s164 + $0x158] sm:$0xff] %v509
        %585 = vst [vmem:[%s164 + $0x160] sm:$0xff] %v399
        %586 = vst [vmem:[%s164 + $0x168] sm:$0xff] %v512
        %587 = vst [vmem:[%s164 + $0x170] sm:$0xff] %v402
        %588 = vst [vmem:[%s164 + $0x178] sm:$0xff] %v515
        %589 = vst [vmem:[%s164 + $0x180] sm:$0xff] %v405
        %590 = vst [vmem:[%s164 + $0x188] sm:$0xff] %v518
        %591 = vst [vmem:[%s164 + $0x190] sm:$0xff] %v408
        %592 = vst [vmem:[%s164 + $0x198] sm:$0xff] %v521
        %593 = vst [vmem:[%s164 + $0x1a0] sm:$0xff] %v411
        %594 = vst [vmem:[%s164 + $0x1a8] sm:$0xff] %v524
        %595 = vst [vmem:[%s164 + $0x1b0] sm:$0xff] %v414
        %596 = vst [vmem:[%s164 + $0x1b8] sm:$0xff] %v527
        %597 = vst [vmem:[%s164 + $0x1c0] sm:$0xff] %v417
        %598 = vst [vmem:[%s164 + $0x1c8] sm:$0xff] %v530
        %599 = vst [vmem:[%s164 + $0x1d0] sm:$0xff] %v420
        %600 = vst [vmem:[%s164 + $0x1d8] sm:$0xff] %v533
        %601 = vst [vmem:[%s164 + $0x1e0] sm:$0xff] %v423
        %602 = vst [vmem:[%s164 + $0x1e8] sm:$0xff] %v536
        %603 = vst [vmem:[%s164 + $0x1f0] sm:$0xff] %v426
        %604 = vst [vmem:[%s164 + $0x1f8] sm:$0xff] %v539
        %s605 = sand.u32 %s93, 1
        %s606 = scalar_lea.sflag [#allocation3], %s605
        %s607 = sand.u32 %s93, 1
        %s608 = smul.addr %s607, 512
        %s609 = scalar_lea.vmem [#allocation2], %s608
        // Predicated region
        $region33: #{tpu_custom_call.1} parent=31 // pred_check
          %p610 = pneg %p103
        $region34: #{tpu_custom_call.1} parent=31 // pred_check_branch
          %612 = sbr.rel (%p610) target = $region36
        $region35: #{tpu_custom_call.1} parent=31 // pred_region
          %s613 = smul.u32 32, %s17
          %615 = vsyncadd %s606, 0
          %s616 = smul.addr %s613, 2
          %s617 = smul.addr %s616, 8
          %s618 = scalar_lea.hbm %s3, %s617
          %s619 = sshll.u32 %s609, 4
          %s620 = int_to_ptr.vmem [resolvable:$true] %s619
          %s621 = sshll.u32 %s618, 4
          %s622 = int_to_ptr.hbm [resolvable:$true] %s621
          %627 = dma.vmem_to_hbm [thread:$0]  %s620, 8192, %s622, %s606, 256, 256, 16
        $region36: #{tpu_custom_call.1} parent=31 // pred_fallthru
          _
      $region32: #{tpu_custom_call.1} parent=5 // pred_fallthru
        _
      %p628 = scmp.le.s32.totalorder 2, %s12
      // Predicated region
      $region37: #{tpu_custom_call.1} parent=5 // pred_check
        %p629 = pneg %p628
      $region38: #{tpu_custom_call.1} parent=5 // pred_check_branch
        %631 = sbr.rel (%p629) target = $region40
      $region39: #{tpu_custom_call.1} parent=5 // pred_region
        %s632 = ssub.s32 %s12, 2
        // Predicated region
        $region41: #{tpu_custom_call.1} parent=39 // pred_check
          %p633 = pneg %p109
        $region42: #{tpu_custom_call.1} parent=39 // pred_check_branch
          %635 = sbr.rel (%p633) target = $region44
        $region43: #{tpu_custom_call.1} parent=39 // pred_region
          %s636 = sand.u32 %s94, 1
          %s637 = scalar_lea.sflag [#allocation3], %s636
          %s638 = sand.u32 %s94, 1
          %s639 = smul.addr %s638, 512
          %s640 = scalar_lea.vmem [#allocation2], %s639
          %642 = dma.done %s637, 8192
        $region44: #{tpu_custom_call.1} parent=39 // pred_fallthru
          _
      $region40: #{tpu_custom_call.1} parent=5 // pred_fallthru
        _
    $region6: #{tpu_custom_call.1} parent=1 // loop_footer
      %s16 = sadd.s32 1, %s12
    $region7: #{tpu_custom_call.1} parent=1 // loop_footer_branch
      %11 = sbr.rel target = $region3
    $region8: #{tpu_custom_call.1} parent=1 // loop_exit
      _
    %643 = vsyncpa [#allocation3], 1
    %s644 = scalar_lea.sflag [#allocation3], 1
    %645 = vsyncpa %s644, 1

</llo_original>
